<compile_context>
chip_gen: v7x
topology: tpu7x:2x2x1
jax: 0.10.0
libtpu: 0.0.40
codegen_flags: <defaults>
</compile_context>

<pallas_src>
import jax
import jax.numpy as jnp
from jax.experimental import pallas as pl
from jax.experimental.pallas import tpu as pltpu


def _net_fidelity_kernel(xt_ref, w1_ref, b1_ref, w2_ref, b2_ref, o_ref):
    """One batch tile; batch on lanes, x1/x2 stacked on the sublane axis.

    xt_ref : (2F, TB)   [x1^T ; x2^T]            (compute dtype)
    w1_ref : (2H, 2F)   blockdiag(W1^T, W1^T)    (compute dtype)
    b1_ref : (2H, 1)    [b1 ; b1]                f32
    w2_ref : (2Q, 2H)   blockdiag(W2^T, W2^T)    (compute dtype)
    b2_ref : (2Q, 1)    [b2 ; b2]                f32
    o_ref  : (1, TB)    f32 fidelity per batch column (lane-dense store)
    """
    q2 = w2_ref.shape[0]
    q = q2 // 2

    # Layer 1: one matmul over TB columns covers both x1 and x2 branches.
    h = jnp.dot(w1_ref[...], xt_ref[...], preferred_element_type=jnp.float32)
    h = jnp.maximum(h + b1_ref[...], 0.0)                             # (2H, TB) f32
    # Layer 2.
    y = jnp.dot(w2_ref[...], h.astype(w2_ref.dtype),
                preferred_element_type=jnp.float32) + b2_ref[...]     # (2Q, TB) f32

    # RY angle-encoding fidelity:
    #   prod_i cos^2((a_i - b_i)/2) = prod_i 0.5 * (1 + cos(a_i - b_i)).
    # (Note: f32 cos range reduction degrades for very large |a-b|; fine for
    #  the tested weight scales.)
    d = y[:q, :] - y[q:, :]                                           # (Q, TB)
    c2 = 0.5 * (1.0 + jnp.cos(d))

    # Product over the tiny static qubit axis.  Power-of-two Q: log2(Q)-step
    # sublane roll tree (full-vreg VPU multiplies, shuffles on the XLU slot).
    # Otherwise: unrolled row product fallback.
    if q > 1 and (q & (q - 1)) == 0:
        fid = c2
        s = q // 2
        while s >= 1:
            fid = fid * pltpu.roll(fid, s, axis=0)
            s //= 2
        o_ref[...] = fid[0:1, :]
    else:
        fid = c2[0:1, :]
        for i in range(1, q):
            fid = fid * c2[i:i + 1, :]
        o_ref[...] = fid


def _round_up(v, m):
    return (v + m - 1) // m * m


def net_fidelity(x1, x2, w1, b1, w2, b2, *, block_b=4096,
                 compute_dtype=jnp.float32):
    """Fused _NetFidelity forward: shared MLP on x1/x2 + fidelity readout.

    compute_dtype=jnp.float32  -> exact PyTorch-forward semantics (default).
    compute_dtype=jnp.bfloat16 -> bf16 MXU operands, f32 accumulate/epilogue.
    """
    B, F = x1.shape
    H = w1.shape[1]
    Q = w2.shape[1]
    assert x2.shape == (B, F)
    assert w1.shape == (F, H) and w2.shape == (H, Q)

    # Batch tile: large enough to amortize per-grid-step overhead, but keep
    # at least ~4 grid blocks when B allows so the "parallel" axis can be
    # sharded across both TensorCores on v7x.  Always a multiple of 128.
    TB = min(_round_up(int(block_b), 128),
             max(128, _round_up(pl.cdiv(B, 4), 128)))
    n_blk = pl.cdiv(B, TB)
    B_pad = n_blk * TB
    pad = B_pad - B

    cd = compute_dtype
    f32 = jnp.float32

    # Layout plumbing (one-shot XLA pre-pass): stack x1/x2 on the feature
    # (sublane) axis, batch on lanes, cast to matmul dtype; only pad the
    # ragged batch tail when needed (pad columns give a == b -> fid 1,
    # sliced off below, no NaNs).
    # TODO(synk): for very large B, accept/cache inputs already in (F, B)
    # compute-dtype layout upstream to skip this extra HBM read/write pass.
    xt = jnp.concatenate([x1.T, x2.T], axis=0).astype(cd)             # (2F, B)
    if pad:
        xt = jnp.pad(xt, ((0, 0), (0, pad)))                          # (2F, B_pad)

    # Block-diagonal shared weights (tiny, stay resident in VMEM).
    z1 = jnp.zeros((H, F), cd)
    w1bd = jnp.block([[w1.T.astype(cd), z1],
                      [z1, w1.T.astype(cd)]])                         # (2H, 2F)
    z2 = jnp.zeros((Q, H), cd)
    w2bd = jnp.block([[w2.T.astype(cd), z2],
                      [z2, w2.T.astype(cd)]])                         # (2Q, 2H)
    b1v = jnp.asarray(b1, f32).reshape(H, 1)
    b2v = jnp.asarray(b2, f32).reshape(Q, 1)
    b1bd = jnp.concatenate([b1v, b1v], axis=0)                        # (2H, 1)
    b2bd = jnp.concatenate([b2v, b2v], axis=0)                        # (2Q, 1)

    out = pl.pallas_call(
        _net_fidelity_kernel,
        out_shape=jax.ShapeDtypeStruct((1, B_pad), jnp.float32),
        grid_spec=pltpu.PrefetchScalarGridSpec(
            num_scalar_prefetch=0,
            grid=(n_blk,),
            in_specs=[
                pl.BlockSpec((2 * F, TB), lambda i: (0, i)),       # [x1^T; x2^T] tile
                pl.BlockSpec((2 * H, 2 * F), lambda i: (0, 0)),    # W1 blockdiag (resident)
                pl.BlockSpec((2 * H, 1), lambda i: (0, 0)),        # b1
                pl.BlockSpec((2 * Q, 2 * H), lambda i: (0, 0)),    # W2 blockdiag (resident)
                pl.BlockSpec((2 * Q, 1), lambda i: (0, 0)),        # b2
            ],
            out_specs=pl.BlockSpec((1, TB), lambda i: (0, i)),
        ),
        compiler_params=pltpu.CompilerParams(
            dimension_semantics=("parallel",)),
    )(xt, w1bd, b1bd, w2bd, b2bd)

    return out[0, :B]   # (B,) fidelity == qnn(concat([nn(x1), nn(x2)], 1))[:, 0]


def net_fidelity_ref(x1, x2, w1, b1, w2, b2, compute_dtype=jnp.float32):
    """Pure-JAX reference (same matmul dtype as the kernel path under test)."""
    cd = compute_dtype

    def mlp(x):
        h = jnp.dot(x.astype(cd), w1.astype(cd),
                    preferred_element_type=jnp.float32) + b1
        h = jnp.maximum(h, 0.0)
        return jnp.dot(h.astype(cd), w2.astype(cd),
                       preferred_element_type=jnp.float32) + b2

    a, b = mlp(x1), mlp(x2)
    c = jnp.cos(0.5 * (a - b))
    return jnp.prod(c * c, axis=-1)


if __name__ == "__main__":
    F, H, Q = 16, 32, 8   # in-features, hidden, num_qubits

    key = jax.random.PRNGKey(0)
    k1, k2, k3, k4 = jax.random.split(key, 4)

    # Deterministic synthetic parameters (shapes implied by nn = Linear-ReLU-Linear).
    w1 = jax.random.normal(k1, (F, H), jnp.float32) * 0.2
    b1 = jax.random.normal(k2, (1, H), jnp.float32) * 0.1
    w2 = jax.random.normal(k3, (H, Q), jnp.float32) * 0.2
    b2 = jax.random.normal(k4, (1, Q), jnp.float32) * 0.1

    # Small demo batch + a multi-tile batch with a ragged tail (exercises the
    # cdiv grid, tail padding, the parallel grid axis, and lane-dense output).
    for B in (8, 1000):
        kx, ky = jax.random.split(jax.random.fold_in(key, B))
        x1 = jax.random.normal(kx, (B, F), jnp.float32)
        x2 = jax.random.normal(ky, (B, F), jnp.float32)

        # Exact-semantics path (f32 matmuls, default) vs. pure-JAX reference.
        out_f32 = jax.block_until_ready(
            net_fidelity(x1, x2, w1, b1, w2, b2, compute_dtype=jnp.float32))
        ref_f32 = net_fidelity_ref(x1, x2, w1, b1, w2, b2,
                                   compute_dtype=jnp.float32)
        assert out_f32.shape == (B,)
        assert jnp.allclose(out_f32, ref_f32, atol=1e-5, rtol=1e-5), (
            B, out_f32, ref_f32)

        # Fast path (bf16 matmul operands, f32 accumulate + f32 cos/prod
        # epilogue) vs. a reference using the same matmul dtype.
        out_bf16 = jax.block_until_ready(
            net_fidelity(x1, x2, w1, b1, w2, b2, compute_dtype=jnp.bfloat16))
        ref_bf16 = net_fidelity_ref(x1, x2, w1, b1, w2, b2,
                                    compute_dtype=jnp.bfloat16)
        assert out_bf16.shape == (B,)
        assert jnp.allclose(out_bf16, ref_bf16, atol=1e-4, rtol=1e-4), (
            B, out_bf16, ref_bf16)

    print("KERNEL_OK")
</pallas_src>

<mosaic_0001>
module attributes {stable_mosaic.version = 11 : i64} {
  func.func @_net_fidelity_kernel(%arg0: i32, %arg1: memref<32x128xf32, #tpu.memory_space<vmem>>, %arg2: memref<64x32xf32, #tpu.memory_space<vmem>>, %arg3: memref<64x1xf32, #tpu.memory_space<vmem>>, %arg4: memref<16x64xf32, #tpu.memory_space<vmem>>, %arg5: memref<16x1xf32, #tpu.memory_space<vmem>>, %arg6: memref<1x128xf32, #tpu.memory_space<vmem>>) attributes {dimension_semantics = [#tpu.dimension_semantics<parallel>], iteration_bounds = array<i64: 1>, scalar_prefetch = 0 : i64, scratch_operands = 0 : i64, tpu.core_type = #tpu.core_type<tc>, window_params = [{transform_indices = @transform_0, window_bounds = array<i64: 32, 128>}, {pipeline_mode = #tpu.pipeline_mode<synchronous>, transform_indices = @transform_1, window_bounds = array<i64: 64, 32>}, {pipeline_mode = #tpu.pipeline_mode<synchronous>, transform_indices = @transform_2, window_bounds = array<i64: 64, 1>}, {pipeline_mode = #tpu.pipeline_mode<synchronous>, transform_indices = @transform_3, window_bounds = array<i64: 16, 64>}, {pipeline_mode = #tpu.pipeline_mode<synchronous>, transform_indices = @transform_4, window_bounds = array<i64: 16, 1>}, {transform_indices = @transform_5, window_bounds = array<i64: 1, 128>}]} {
    %c0 = arith.constant 0 : index
    %c0_0 = arith.constant 0 : index
    %0 = vector.load %arg2[%c0, %c0_0] : memref<64x32xf32, #tpu.memory_space<vmem>>, vector<64x32xf32>
    %c0_1 = arith.constant 0 : index
    %c0_2 = arith.constant 0 : index
    %1 = vector.load %arg1[%c0_1, %c0_2] : memref<32x128xf32, #tpu.memory_space<vmem>>, vector<32x128xf32>
    %cst = arith.constant dense<0.000000e+00> : vector<64x128xf32>
    %2 = tpu.matmul %0, %1, %cst {dimension_numbers = #tpu.dot_dimension_numbers<[1], [0], [0], [1], [0, 0, 1, 1], [], []>} : vector<64x32xf32>, vector<32x128xf32>, vector<64x128xf32> -> vector<64x128xf32>
    %c0_3 = arith.constant 0 : index
    %c0_4 = arith.constant 0 : index
    %3 = vector.load %arg3[%c0_3, %c0_4] : memref<64x1xf32, #tpu.memory_space<vmem>>, vector<64x1xf32>
    %4 = vector.broadcast %3 : vector<64x1xf32> to vector<64x128xf32>
    %5 = arith.addf %2, %4 : vector<64x128xf32>
    %cst_5 = arith.constant 0.000000e+00 : f32
    %6 = vector.broadcast %cst_5 : f32 to vector<64x128xf32>
    %7 = arith.maximumf %5, %6 : vector<64x128xf32>
    %c0_6 = arith.constant 0 : index
    %c0_7 = arith.constant 0 : index
    %8 = vector.load %arg4[%c0_6, %c0_7] : memref<16x64xf32, #tpu.memory_space<vmem>>, vector<16x64xf32>
    %cst_8 = arith.constant dense<0.000000e+00> : vector<16x128xf32>
    %9 = tpu.matmul %8, %7, %cst_8 {dimension_numbers = #tpu.dot_dimension_numbers<[1], [0], [0], [1], [0, 0, 1, 1], [], []>} : vector<16x64xf32>, vector<64x128xf32>, vector<16x128xf32> -> vector<16x128xf32>
    %c0_9 = arith.constant 0 : index
    %c0_10 = arith.constant 0 : index
    %10 = vector.load %arg5[%c0_9, %c0_10] : memref<16x1xf32, #tpu.memory_space<vmem>>, vector<16x1xf32>
    %11 = vector.broadcast %10 : vector<16x1xf32> to vector<16x128xf32>
    %12 = arith.addf %9, %11 : vector<16x128xf32>
    %13 = vector.extract_strided_slice %12 {offsets = [0, 0], sizes = [8, 128], strides = [1, 1]} : vector<16x128xf32> to vector<8x128xf32>
    %14 = vector.extract_strided_slice %12 {offsets = [8, 0], sizes = [8, 128], strides = [1, 1]} : vector<16x128xf32> to vector<8x128xf32>
    %15 = arith.subf %13, %14 : vector<8x128xf32>
    %16 = math.cos %15 : vector<8x128xf32>
    %cst_11 = arith.constant 1.000000e+00 : f32
    %17 = vector.broadcast %cst_11 : f32 to vector<8x128xf32>
    %18 = arith.addf %17, %16 : vector<8x128xf32>
    %cst_12 = arith.constant 5.000000e-01 : f32
    %19 = vector.broadcast %cst_12 : f32 to vector<8x128xf32>
    %20 = arith.mulf %19, %18 : vector<8x128xf32>
    %c4_i32 = arith.constant 4 : i32
    %21 = tpu.dynamic_rotate %20 by %c4_i32 dim 0 : vector<8x128xf32>, i32 -> vector<8x128xf32>
    %22 = arith.mulf %20, %21 : vector<8x128xf32>
    %c2_i32 = arith.constant 2 : i32
    %23 = tpu.dynamic_rotate %22 by %c2_i32 dim 0 : vector<8x128xf32>, i32 -> vector<8x128xf32>
    %24 = arith.mulf %22, %23 : vector<8x128xf32>
    %c1_i32 = arith.constant 1 : i32
    %25 = tpu.dynamic_rotate %24 by %c1_i32 dim 0 : vector<8x128xf32>, i32 -> vector<8x128xf32>
    %26 = arith.mulf %24, %25 : vector<8x128xf32>
    %27 = vector.extract_strided_slice %26 {offsets = [0, 0], sizes = [1, 128], strides = [1, 1]} : vector<8x128xf32> to vector<1x128xf32>
    %c0_13 = arith.constant 0 : index
    %c0_14 = arith.constant 0 : index
    %28 = vector.load %arg6[%c0_13, %c0_14] : memref<1x128xf32, #tpu.memory_space<vmem>>, vector<1x128xf32>
    tpu.vector_store %arg6[%c0_13, %c0_14], %27 {strides = array<i32>} : memref<1x128xf32, #tpu.memory_space<vmem>>, vector<1x128xf32>,
    return
  }
  func.func @transform_0(%arg0: i32) -> (i32, i32) {
    %c0_i32 = arith.constant 0 : i32
    %c0_i32_0 = arith.constant 0 : i32
    return %c0_i32, %arg0 : i32, i32
  }
  func.func @transform_1(%arg0: i32) -> (i32, i32) {
    %c0_i32 = arith.constant 0 : i32
    %c0_i32_0 = arith.constant 0 : i32
    %c0_i32_1 = arith.constant 0 : i32
    return %c0_i32, %c0_i32_0 : i32, i32
  }
  func.func @transform_2(%arg0: i32) -> (i32, i32) {
    %c0_i32 = arith.constant 0 : i32
    %c0_i32_0 = arith.constant 0 : i32
    %c0_i32_1 = arith.constant 0 : i32
    return %c0_i32, %c0_i32_0 : i32, i32
  }
  func.func @transform_3(%arg0: i32) -> (i32, i32) {
    %c0_i32 = arith.constant 0 : i32
    %c0_i32_0 = arith.constant 0 : i32
    %c0_i32_1 = arith.constant 0 : i32
    return %c0_i32, %c0_i32_0 : i32, i32
  }
  func.func @transform_4(%arg0: i32) -> (i32, i32) {
    %c0_i32 = arith.constant 0 : i32
    %c0_i32_0 = arith.constant 0 : i32
    %c0_i32_1 = arith.constant 0 : i32
    return %c0_i32, %c0_i32_0 : i32, i32
  }
  func.func @transform_5(%arg0: i32) -> (i32, i32) {
    %c0_i32 = arith.constant 0 : i32
    %c0_i32_0 = arith.constant 0 : i32
    return %c0_i32, %arg0 : i32, i32
  }
}

</mosaic_0001>

<llo_original>
// kernel: tpu_custom_call.1
$region0: #{tpu_custom_call.1}
  #allocation0 [shape = 'u32[]', space=smem, size = 0x4, offset = 0x4, fixed_abs, tag = 'smem constant byte address 0x4 - core index']
  #allocation1 [shape = 'u32[144,128]{1,0:T(1,128)}', space=vmem, size = 0x12000, scoped, tag = 'internal scratch']
  %s0 = inlined_call_operand.vmem [shape: f32[32,128], index: 0, kind: input, shape index: {}]
  %s1 = inlined_call_operand.vmem [shape: f32[64,32], index: 1, kind: input, shape index: {}]
  %s2 = inlined_call_operand.vmem [shape: f32[64,1], index: 2, kind: input, shape index: {}]
  %s3 = inlined_call_operand.vmem [shape: f32[16,64], index: 3, kind: input, shape index: {}]
  %s4 = inlined_call_operand.vmem [shape: f32[16,1], index: 4, kind: input, shape index: {}]
  %s5 = inlined_call_operand.hbm [shape: f32[1,128], index: 5, kind: output, shape index: {}]
  %s6 = sld [smem:[#allocation0]]
  $region30: #{tpu_custom_call.1} parent=0
    _
  %s8 = ssub.s32 1, %s6
  %s9 = scalar_select 0, %s8, %s6
  $region1: #{tpu_custom_call.1} parent=0
    #allocation2 [shape = 'u8[512]{0}', space=vmem, size = 0x400, scoped, tag = 'output window, operand 0, single buffered']
    #allocation3 [shape = 's32[1]{0}', space=sflag, size = 0x4, scoped, tag = 'scoped memory for tpu_custom_call.1']
    %10 = vsyncpa [#allocation3], 0
    // Predicated region
    $region2: #{tpu_custom_call.1} parent=1 // pred_check
      _
    $region3: #{tpu_custom_call.1} parent=1 // pred_check_branch
      %12 = sbr.rel (0) target = $region5
    $region4: #{tpu_custom_call.1} parent=1 // pred_region
      _
    $region5: #{tpu_custom_call.1} parent=1 // pred_fallthru
      _
    // Predicated region
    $region6: #{tpu_custom_call.1} parent=1 // pred_check
      _
    $region7: #{tpu_custom_call.1} parent=1 // pred_check_branch
      %14 = sbr.rel (0) target = $region9
    $region8: #{tpu_custom_call.1} parent=1 // pred_region
      _
    $region9: #{tpu_custom_call.1} parent=1 // pred_fallthru
      _
    // Predicated region
    $region10: #{tpu_custom_call.1} parent=1 // pred_check
      _
    $region11: #{tpu_custom_call.1} parent=1 // pred_check_branch
      %16 = sbr.rel (0) target = $region13
    $region12: #{tpu_custom_call.1} parent=1 // pred_region
      _
    $region13: #{tpu_custom_call.1} parent=1 // pred_fallthru
      _
    // Predicated region
    $region14: #{tpu_custom_call.1} parent=1 // pred_check
      _
    $region15: #{tpu_custom_call.1} parent=1 // pred_check_branch
      %18 = sbr.rel (0) target = $region17
    $region16: #{tpu_custom_call.1} parent=1 // pred_region
      _
    $region17: #{tpu_custom_call.1} parent=1 // pred_fallthru
      _
    // Predicated region
    $region18: #{tpu_custom_call.1} parent=1 // pred_check
      _
    $region19: #{tpu_custom_call.1} parent=1 // pred_check_branch
      %20 = sbr.rel (0) target = $region21
    $region20: #{tpu_custom_call.1} parent=1 // pred_region
      _
    $region21: #{tpu_custom_call.1} parent=1 // pred_fallthru
      _
    %v21 = vld [vmem:[%s1] sm:$0xff]
    %v22 = vld [vmem:[%s1 + $0x8] sm:$0xff]
    %v23 = vld [vmem:[%s1 + $0x10] sm:$0xff]
    %v24 = vld [vmem:[%s1 + $0x18] sm:$0xff]
    %v25 = vld [vmem:[%s1 + $0x20] sm:$0xff]
    %v26 = vld [vmem:[%s1 + $0x28] sm:$0xff]
    %v27 = vld [vmem:[%s1 + $0x30] sm:$0xff]
    %v28 = vld [vmem:[%s1 + $0x38] sm:$0xff]
    %v29 = vld [vmem:[%s0] sm:$0xff]
    %v30 = vld [vmem:[%s0 + $0x8] sm:$0xff]
    %v31 = vld [vmem:[%s0 + $0x10] sm:$0xff]
    %v32 = vld [vmem:[%s0 + $0x18] sm:$0xff]
    %v33 = vld [vmem:[%s2] sm:$0xff]
    %v34 = vld [vmem:[%s2 + $0x8] sm:$0xff]
    %v35 = vld [vmem:[%s2 + $0x10] sm:$0xff]
    %v36 = vld [vmem:[%s2 + $0x18] sm:$0xff]
    %v37 = vld [vmem:[%s2 + $0x20] sm:$0xff]
    %v38 = vld [vmem:[%s2 + $0x28] sm:$0xff]
    %v39 = vld [vmem:[%s2 + $0x30] sm:$0xff]
    %v40 = vld [vmem:[%s2 + $0x38] sm:$0xff]
    %42 = vset.pattern.permute.xlu0 0
    %43 = vperm.xlu0 %42, %v33
    %v44 = vpop.permute.xlu0 %43
    %47 = vset.pattern.permute.xlu0 0
    %48 = vperm.xlu0 %47, %v34
    %v49 = vpop.permute.xlu0 %48
    %52 = vset.pattern.permute.xlu0 0
    %53 = vperm.xlu0 %52, %v35
    %v54 = vpop.permute.xlu0 %53
    %57 = vset.pattern.permute.xlu0 0
    %58 = vperm.xlu0 %57, %v36
    %v59 = vpop.permute.xlu0 %58
    %62 = vset.pattern.permute.xlu0 0
    %63 = vperm.xlu0 %62, %v37
    %v64 = vpop.permute.xlu0 %63
    %67 = vset.pattern.permute.xlu0 0
    %68 = vperm.xlu0 %67, %v38
    %v69 = vpop.permute.xlu0 %68
    %72 = vset.pattern.permute.xlu0 0
    %73 = vperm.xlu0 %72, %v39
    %v74 = vpop.permute.xlu0 %73
    %77 = vset.pattern.permute.xlu0 0
    %78 = vperm.xlu0 %77, %v40
    %v79 = vpop.permute.xlu0 %78
    %vm81 = vcmask 261120
    %v83 = vsel %vm81, %v21, 0
    %v86 = vsel %vm81, %v22, 0
    %v89 = vsel %vm81, %v23, 0
    %v92 = vsel %vm81, %v24, 0
    %v95 = vsel %vm81, %v25, 0
    %v98 = vsel %vm81, %v26, 0
    %v101 = vsel %vm81, %v27, 0
    %v104 = vsel %vm81, %v28, 0
    %106 = vmatprep.subr.mxu0 0.0
    %107 = vmatpush1.msra.mxu0 %v29
    %108 = vmatprep.subr.mxu0 0.0
    %109 = vmatpush1.msra.mxu0 %v30
    %110 = vmatprep.subr.mxu0 0.0
    %111 = vmatpush1.msra.mxu0 %v31
    %112 = vmatprep.subr.mxu0 0.0
    %113 = vmatpush1.msra.mxu0 %v32
    %114 = vmatprep.subr.mxu0 0.0
    %115 = vmatpush1.msra.mxu0 0.0
    %116 = vmatprep.subr.mxu0 0.0
    %117 = vmatpush1.msra.mxu0 0.0
    %118 = vmatprep.subr.mxu0 0.0
    %119 = vmatpush1.msra.mxu0 0.0
    %120 = vmatprep.subr.mxu0 0.0
    %121 = vmatpush1.msra.mxu0 0.0
    %122 = vmatprep.subr.mxu0 0.0
    %123 = vmatpush1.msra.mxu0 0.0
    %124 = vmatprep.subr.mxu0 0.0
    %125 = vmatpush1.msra.mxu0 0.0
    %126 = vmatprep.subr.mxu0 0.0
    %127 = vmatpush1.msra.mxu0 0.0
    %128 = vmatprep.subr.mxu0 0.0
    %129 = vmatpush1.msra.mxu0 0.0
    %130 = vmatprep.subr.mxu0 0.0
    %131 = vmatpush1.msra.mxu0 0.0
    %132 = vmatprep.subr.mxu0 0.0
    %133 = vmatpush1.msra.mxu0 0.0
    %134 = vmatprep.subr.mxu0 0.0
    %135 = vmatpush1.msra.mxu0 0.0
    %136 = vmatprep.subr.mxu0 0.0
    %137 = vmatpush1.msra.mxu0 0.0
    %138 = vmatprep.subr.mxu0 0.0
    %139 = vmatpush1.msra.mxu0 0.0
    %140 = vmatprep.subr.mxu0 0.0
    %141 = vmatpush1.msra.mxu0 0.0
    %142 = vmatprep.subr.mxu0 0.0
    %143 = vmatpush1.msra.mxu0 0.0
    %144 = vmatprep.subr.mxu0 0.0
    %145 = vmatpush1.msra.mxu0 0.0
    %146 = vmatprep.subr.mxu0 0.0
    %147 = vmatpush1.msra.mxu0 0.0
    %148 = vmatprep.subr.mxu0 0.0
    %149 = vmatpush1.msra.mxu0 0.0
    %150 = vmatprep.subr.mxu0 0.0
    %151 = vmatpush1.msra.mxu0 0.0
    %152 = vmatprep.subr.mxu0 0.0
    %153 = vmatpush1.msra.mxu0 0.0
    %154 = vmatprep.subr.mxu0 0.0
    %155 = vmatpush1.msra.mxu0 0.0
    %156 = vmatprep.subr.mxu0 0.0
    %157 = vmatpush1.msra.mxu0 0.0
    %158 = vmatprep.subr.mxu0 0.0
    %159 = vmatpush1.msra.mxu0 0.0
    %160 = vmatprep.subr.mxu0 0.0
    %161 = vmatpush1.msra.mxu0 0.0
    %162 = vmatprep.subr.mxu0 0.0
    %163 = vmatpush1.msra.mxu0 0.0
    %164 = vmatprep.subr.mxu0 0.0
    %165 = vmatpush1.msra.mxu0 0.0
    %166 = vmatprep.subr.mxu0 0.0
    %167 = vmatpush1.msra.mxu0 0.0
    %168 = vmatprep.subr.mxu0 0.0
    %169 = vmatpush1.msra.mxu0 0.0
    %170 = vmatprep.mubr.f32.mxu0 0.0
    %171 = vmatmul.mubr.f32.gmra.mrb[0].mxu0 %v83
    %v172 = vpop.f32.mrb[0].mxu0
    %v173 = vadd.f32 %v44, %v172
    %v174 = vpop.f32.mrb[0].mxu0
    %175 = vmatprep.mubr.f32.mxu0 0.0
    %176 = vmatmul.mubr.f32.gmra.mrb[0].mxu0 %v86
    %v177 = vpop.f32.mrb[0].mxu0
    %v178 = vadd.f32 %v49, %v177
    %v179 = vpop.f32.mrb[0].mxu0
    %180 = vmatprep.mubr.f32.mxu0 0.0
    %181 = vmatmul.mubr.f32.gmra.mrb[0].mxu0 %v89
    %v182 = vpop.f32.mrb[0].mxu0
    %v183 = vadd.f32 %v54, %v182
    %v184 = vpop.f32.mrb[0].mxu0
    %185 = vmatprep.mubr.f32.mxu0 0.0
    %186 = vmatmul.mubr.f32.gmra.mrb[0].mxu0 %v92
    %v187 = vpop.f32.mrb[0].mxu0
    %v188 = vadd.f32 %v59, %v187
    %v189 = vpop.f32.mrb[0].mxu0
    %190 = vmatprep.mubr.f32.mxu0 0.0
    %191 = vmatmul.mubr.f32.gmra.mrb[0].mxu0 %v95
    %v192 = vpop.f32.mrb[0].mxu0
    %v193 = vadd.f32 %v64, %v192
    %v194 = vpop.f32.mrb[0].mxu0
    %195 = vmatprep.mubr.f32.mxu0 0.0
    %196 = vmatmul.mubr.f32.gmra.mrb[0].mxu0 %v98
    %v197 = vpop.f32.mrb[0].mxu0
    %v198 = vadd.f32 %v69, %v197
    %v199 = vpop.f32.mrb[0].mxu0
    %200 = vmatprep.mubr.f32.mxu0 0.0
    %201 = vmatmul.mubr.f32.gmra.mrb[0].mxu0 %v101
    %v202 = vpop.f32.mrb[0].mxu0
    %v203 = vadd.f32 %v74, %v202
    %v204 = vpop.f32.mrb[0].mxu0
    %205 = vmatprep.mubr.f32.mxu0 0.0
    %206 = vmatmul.mubr.f32.gmra.mrb[0].mxu0 %v104
    %v207 = vpop.f32.mrb[0].mxu0
    %v208 = vadd.f32 %v79, %v207
    %v209 = vpop.f32.mrb[0].mxu0
    %210 = vdwg.mxu0
    %v211 = vmax.f32 %v173, 0.0
    %v212 = vmax.f32 %v178, 0.0
    %v213 = vmax.f32 %v183, 0.0
    %v214 = vmax.f32 %v188, 0.0
    %v215 = vmax.f32 %v193, 0.0
    %v216 = vmax.f32 %v198, 0.0
    %v217 = vmax.f32 %v203, 0.0
    %v218 = vmax.f32 %v208, 0.0
    %v219 = vld [vmem:[%s3] sm:$0xff]
    %v220 = vld [vmem:[%s3 + $0x8] sm:$0xff]
    %v221 = vld [vmem:[%s4] sm:$0xff]
    %v222 = vld [vmem:[%s4 + $0x8] sm:$0xff]
    %224 = vset.pattern.permute.xlu0 0
    %225 = vperm.xlu0 %224, %v221
    %v226 = vpop.permute.xlu0 %225
    %229 = vset.pattern.permute.xlu0 0
    %230 = vperm.xlu0 %229, %v222
    %v231 = vpop.permute.xlu0 %230
    %vm233 = vcmask 523264
    %v235 = vsel %vm233, %v219, 0
    %v238 = vsel %vm233, %v220, 0
    %240 = vmatprep.subr.mxu0 0.0
    %241 = vmatpush1.msra.mxu0 %v211
    %242 = vmatprep.subr.mxu0 0.0
    %243 = vmatpush1.msra.mxu0 %v212
    %244 = vmatprep.subr.mxu0 0.0
    %245 = vmatpush1.msra.mxu0 %v213
    %246 = vmatprep.subr.mxu0 0.0
    %247 = vmatpush1.msra.mxu0 %v214
    %248 = vmatprep.subr.mxu0 0.0
    %249 = vmatpush1.msra.mxu0 %v215
    %250 = vmatprep.subr.mxu0 0.0
    %251 = vmatpush1.msra.mxu0 %v216
    %252 = vmatprep.subr.mxu0 0.0
    %253 = vmatpush1.msra.mxu0 %v217
    %254 = vmatprep.subr.mxu0 0.0
    %255 = vmatpush1.msra.mxu0 %v218
    %256 = vmatprep.subr.mxu0 0.0
    %257 = vmatpush1.msra.mxu0 0.0
    %258 = vmatprep.subr.mxu0 0.0
    %259 = vmatpush1.msra.mxu0 0.0
    %260 = vmatprep.subr.mxu0 0.0
    %261 = vmatpush1.msra.mxu0 0.0
    %262 = vmatprep.subr.mxu0 0.0
    %263 = vmatpush1.msra.mxu0 0.0
    %264 = vmatprep.subr.mxu0 0.0
    %265 = vmatpush1.msra.mxu0 0.0
    %266 = vmatprep.subr.mxu0 0.0
    %267 = vmatpush1.msra.mxu0 0.0
    %268 = vmatprep.subr.mxu0 0.0
    %269 = vmatpush1.msra.mxu0 0.0
    %270 = vmatprep.subr.mxu0 0.0
    %271 = vmatpush1.msra.mxu0 0.0
    %272 = vmatprep.subr.mxu0 0.0
    %273 = vmatpush1.msra.mxu0 0.0
    %274 = vmatprep.subr.mxu0 0.0
    %275 = vmatpush1.msra.mxu0 0.0
    %276 = vmatprep.subr.mxu0 0.0
    %277 = vmatpush1.msra.mxu0 0.0
    %278 = vmatprep.subr.mxu0 0.0
    %279 = vmatpush1.msra.mxu0 0.0
    %280 = vmatprep.subr.mxu0 0.0
    %281 = vmatpush1.msra.mxu0 0.0
    %282 = vmatprep.subr.mxu0 0.0
    %283 = vmatpush1.msra.mxu0 0.0
    %284 = vmatprep.subr.mxu0 0.0
    %285 = vmatpush1.msra.mxu0 0.0
    %286 = vmatprep.subr.mxu0 0.0
    %287 = vmatpush1.msra.mxu0 0.0
    %288 = vmatprep.subr.mxu0 0.0
    %289 = vmatpush1.msra.mxu0 0.0
    %290 = vmatprep.subr.mxu0 0.0
    %291 = vmatpush1.msra.mxu0 0.0
    %292 = vmatprep.subr.mxu0 0.0
    %293 = vmatpush1.msra.mxu0 0.0
    %294 = vmatprep.subr.mxu0 0.0
    %295 = vmatpush1.msra.mxu0 0.0
    %296 = vmatprep.subr.mxu0 0.0
    %297 = vmatpush1.msra.mxu0 0.0
    %298 = vmatprep.subr.mxu0 0.0
    %299 = vmatpush1.msra.mxu0 0.0
    %300 = vmatprep.subr.mxu0 0.0
    %301 = vmatpush1.msra.mxu0 0.0
    %302 = vmatprep.subr.mxu0 0.0
    %303 = vmatpush1.msra.mxu0 0.0
    %304 = vmatprep.mubr.f32.mxu0 0.0
    %305 = vmatmul.mubr.f32.gmra.mrb[0].mxu0 %v235
    %v306 = vpop.f32.mrb[0].mxu0
    %v307 = vadd.f32 %v226, %v306
    %v308 = vpop.f32.mrb[0].mxu0
    %309 = vmatprep.mubr.f32.mxu0 0.0
    %310 = vmatmul.mubr.f32.gmra.mrb[0].mxu0 %v238
    %v311 = vpop.f32.mrb[0].mxu0
    %v312 = vadd.f32 %v231, %v311
    %v313 = vpop.f32.mrb[0].mxu0
    %314 = vdwg.mxu0
    %v315 = vsub.f32 %v307, %v312
    %v316 = vand.u32 2147483647, %v315
    %vm317 = vcmp.le.f32.partialorder %v316, 0.7853982
    %vm318 = vcmp.lt.s32.totalorder %v315, 0
    %v319 = vand.u32 %v315, 2139095040
    %v320 = vshrl.u32 %v319, 23
    %v321 = vsub.s32 %v320, 127
    %v322 = vand.u32 2147483647, %v315
    %v323 = vand.u32 %v322, 8388607
    %v324 = vor.u32 %v323, 8388608
    %v325 = vsub.s32 0, %v324
    %v326 = vadd.s32 %v321, 1
    %vm327 = vcmp.gt.s32.totalorder %v326, 0
    %v328 = vsel %vm327, %v326, 0
    %v329 = vshrl.u32 %v328, 5
    %v330 = vand.u32 %v328, 31
    %v331 = vsub.s32 32, %v330
    %v332 = vshrl.u32 683565275, %v331
    %v333 = vshll.u32 683565275, %v330
    %v334 = vshrl.u32 2475754826, %v331
    %v335 = vor.u32 %v333, %v334
    %v336 = vshll.u32 2475754826, %v330
    %v337 = vshrl.u32 2131351028, %v331
    %v338 = vor.u32 %v336, %v337
    %v339 = vshll.u32 2131351028, %v330
    %v340 = vshrl.u32 2102212464, %v331
    %v341 = vor.u32 %v339, %v340
    %v342 = vshll.u32 2102212464, %v330
    %v343 = vshrl.u32 920167782, %v331
    %v344 = vor.u32 %v342, %v343
    %v345 = vshll.u32 920167782, %v330
    %v346 = vshrl.u32 1326507024, %v331
    %v347 = vor.u32 %v345, %v346
    %vm348 = vcmp.lt.s32.totalorder %v329, 1
    %vm349 = vcmp.lt.s32.totalorder %v329, 2
    %vm350 = vcmp.lt.s32.totalorder %v329, 3
    %vm351 = vcmp.lt.s32.totalorder %v329, 4
    %v352 = vsel %vm348, %v332, %v335
    %v353 = vsel %vm351, %v341, 2102212464
    %v354 = vsel %vm350, %v338, %v353
    %v355 = vsel %vm349, %v352, %v354
    %v356 = vsel %vm348, %v335, %v338
    %v357 = vsel %vm351, %v344, 920167782
    %v358 = vsel %vm350, %v341, %v357
    %v359 = vsel %vm349, %v356, %v358
    %v360 = vsel %vm348, %v338, %v341
    %v361 = vsel %vm351, %v347, 1326507024
    %v362 = vsel %vm350, %v344, %v361
    %v363 = vsel %vm349, %v360, %v362
    %v364 = vshll.u32 %v324, 8
    %v365 = vmul.u32.u64.compose %v364, %v363
    %v366 = vextract.low.u32 %v365
    %v367 = vextract.high.u32 %v365
    %v368 = vmul.u32.u64.compose %v364, %v359
    %v369 = vextract.low.u32 %v368
    %v370 = vextract.high.u32 %v368
    %v371 = vmul.u32 %v364, %v355
    %v372 = vadd.s32 %v367, %v369
    %vm373 = vc.u32 %v367, %v369
    %v374 = vadd.s32 %v370, 1
    %v375 = vsel %vm373, %v374, %v370
    %v376 = vadd.s32 %v371, %v375
    %v377 = vadd.s32 %v376, 536870912
    %v378 = vshrl.u32 %v377, 30
    %v379 = vshll.u32 %v378, 30
    %v380 = vsub.s32 %v376, %v379
    %vm381 = vcmp.lt.s32.totalorder %v380, 0
    %v382 = vsub.s32 0, %v380
    %v383 = vsel %vm381, %v382, %v380
    %v384 = vclz %v383
    %v385 = vsub.s32 %v384, 2
    %vm386 = vcmp.gt.s32.totalorder 0, %v385
    %v387 = vsel %vm386, 0, %v385
    %v388 = vsub.s32 32, %v387
    %v389 = vshll.u32 %v380, %v387
    %v390 = vshrl.u32 %v372, %v388
    %v391 = vor.u32 %v389, %v390
    %v392 = vsub.s32 4294967266, %v387
    %v393 = vadd.s32 %v392, 127
    %v394 = vshll.u32 %v393, 23
    %v395 = vor.u32 4788187, %v394
    %v396 = vand.u32 2147483647, %v395
    %v398 = vcvt.s32.f32 %v391
    %v399 = vmul.f32 %v398, %v396
    %v400 = vxor.u32 %v399, 2147483648
    %v401 = vsel %vm318, %v400, %v399
    %v402 = vsub.s32 4, %v378
    %v403 = vsel %vm318, %v402, %v378
    %v404 = vsel %vm317, %v315, %v401
    %v405 = vsel %vm317, 0, %v403
    %v406 = vcosq.f32.pop %v404
    %v407 = vsinq.f32.pop %v404
    %vm408 = vweird.f32 %v315
    %v409 = vand.u32 %v405, 3
    %vm410 = vcmp.lt.s32.totalorder %v409, 2
    %vm411 = vcmp.eq.s32.totalorder %v409, 0
    %v412 = vxor.u32 %v407, 2147483648
    %v413 = vsel %vm411, %v406, %v412
    %vm414 = vcmp.eq.s32.totalorder %v409, 2
    %v415 = vxor.u32 %v406, 2147483648
    %v416 = vsel %vm414, %v415, %v407
    %v417 = vsel %vm410, %v413, %v416
    %v418 = vsel %vm408, nan, %v417
    %v419 = vadd.f32 %v418, 1.0
    %v420 = vmul.f32 %v419, 0.5
    %v421 = vrot.slane %v420, 4
    %v422 = vmul.f32 %v420, %v421
    %v423 = vrot.slane %v422, 6
    %v424 = vmul.f32 %v422, %v423
    %v425 = vrot.slane %v424, 7
    %v426 = vmul.f32 %v424, %v425
    %427 = vst [vmem:[#allocation2] sm:$0x1] %v426
    // Predicated region
    $region22: #{tpu_custom_call.1} parent=1 // pred_check
      _
    $region23: #{tpu_custom_call.1} parent=1 // pred_check_branch
      %429 = sbr.rel (0) target = $region25
    $region24: #{tpu_custom_call.1} parent=1 // pred_region
      %s431 = ssub.s32 16, 16
      %432 = vsyncadd [#allocation3], %s431
      %s434 = sshll.u32 [#allocation2], 4
      %s435 = int_to_ptr.vmem [resolvable:$true] %s434
      %437 = dma.vmem_to_hbm [thread:$0]  %s435, 16, %s5, [#allocation3]
    $region25: #{tpu_custom_call.1} parent=1 // pred_fallthru
      _
    // Predicated region
    $region26: #{tpu_custom_call.1} parent=1 // pred_check
      _
    $region27: #{tpu_custom_call.1} parent=1 // pred_check_branch
      %439 = sbr.rel (0) target = $region29
    $region28: #{tpu_custom_call.1} parent=1 // pred_region
      %440 = dma.done [#allocation3], 16
    $region29: #{tpu_custom_call.1} parent=1 // pred_fallthru
      _
    %441 = vsyncpa [#allocation3], 1

</llo_original>
